<compile_context>
chip_gen: v6e
topology: v6e:2x2x1
jax: 0.10.0
libtpu: 0.0.40
codegen_flags: <defaults>
</compile_context>

<pallas_src>
import functools

import jax
import jax.numpy as jnp
import numpy as np
from jax.experimental import pallas as pl
from jax.experimental.pallas import tpu as pltpu


def _background_suppression_kernel(x_ref, o_ref):
    """Processes one (BLOCK_ROWS, H*W) tile; each row is one (n, c) plane."""
    x = x_ref[...].astype(jnp.float32)                      # (BR, HW)
    inv_hw = jnp.float32(1.0 / x.shape[-1])
    avg = jnp.sum(x, axis=-1, keepdims=True) * inv_hw       # spatial mean (XLU)
    diff = x - avg
    out = x + diff * jnp.exp(jnp.abs(diff))                 # exp on EUP
    o_ref[...] = jnp.clip(out, 0.0, 1.0).astype(o_ref.dtype)


def _round_up(a, b):
    return (a + b - 1) // b * b


def _pick_block_rows(rows_pad, hw):
    # Conservative per-row VMEM cost: in + out + one f32 temp, all counted at
    # f32 width, with the in/out double-buffered by the Pallas pipeline.
    per_row_bytes = hw * 4 * 6
    budget_bytes = 12 * 1024 * 1024                          # well under scoped VMEM
    max_rows = max(8, (budget_bytes // per_row_bytes) // 8 * 8)
    return int(min(rows_pad, max_rows, 1024))


@jax.jit
def background_suppression(x_nchw):
    N, C, H, W = x_nchw.shape
    HW = H * W
    rows = N * C

    # (N*C) rows x flattened-spatial lanes; reshape of contiguous NCHW is free.
    x2 = x_nchw.reshape(rows, HW)

    # Sublane dim must be a multiple of 8; pad rows (padded rows are
    # independent garbage and are sliced off afterwards).
    rows_pad = _round_up(rows, 8)
    if rows_pad != rows:
        x2 = jnp.pad(x2, ((0, rows_pad - rows), (0, 0)))

    # Lane dim is the full spatial plane (full-extent block, legal for any HW
    # and 128-dense for real model sizes).  Row blocks sized from VMEM budget;
    # partial edge blocks are fine because every row is independent.
    block_rows = _pick_block_rows(rows_pad, HW)
    grid = (pl.cdiv(rows_pad, block_rows),)

    out = pl.pallas_call(
        _background_suppression_kernel,
        out_shape=jax.ShapeDtypeStruct((rows_pad, HW), x_nchw.dtype),
        grid=grid,
        in_specs=[pl.BlockSpec((block_rows, HW), lambda i: (i, 0))],
        out_specs=pl.BlockSpec((block_rows, HW), lambda i: (i, 0)),
        compiler_params=pltpu.CompilerParams(
            dimension_semantics=("parallel",)),
    )(x2)

    return out[:rows].reshape(N, C, H, W)


def _reference(x):
    """Pure-JAX reference matching the PyTorch forward."""
    avg = jnp.mean(x, axis=(2, 3), keepdims=True)
    diff = x - avg
    kern = jnp.exp(jnp.abs(diff))
    return jnp.clip(x + diff * kern, 0.0, 1.0)


if __name__ == "__main__":
    key = jax.random.PRNGKey(0)
    N, C, H, W = 2, 4, 16, 16
    x = jax.random.normal(key, (N, C, H, W), jnp.float32)

    out = background_suppression(x)
    jax.block_until_ready(out)

    ref = _reference(x)
    assert out.shape == (N, C, H, W)
    assert out.dtype == x.dtype
    np.testing.assert_allclose(np.asarray(out), np.asarray(ref),
                               rtol=1e-5, atol=1e-5)
    print("KERNEL_OK")
</pallas_src>

<mosaic_0001>
module attributes {stable_mosaic.version = 11 : i64} {
  func.func @_background_suppression_kernel(%arg0: i32, %arg1: memref<8x256xf32, #tpu.memory_space<vmem>>, %arg2: memref<8x256xf32, #tpu.memory_space<vmem>>) attributes {dimension_semantics = [#tpu.dimension_semantics<parallel>], iteration_bounds = array<i64: 1>, scalar_prefetch = 0 : i64, scratch_operands = 0 : i64, tpu.core_type = #tpu.core_type<tc>, window_params = [{transform_indices = @transform_0, window_bounds = array<i64: 8, 256>}, {transform_indices = @transform_1, window_bounds = array<i64: 8, 256>}]} {
    %c0 = arith.constant 0 : index
    %c0_0 = arith.constant 0 : index
    %0 = vector.load %arg1[%c0, %c0_0] : memref<8x256xf32, #tpu.memory_space<vmem>>, vector<8x256xf32>
    %cst = arith.constant dense<0.000000e+00> : vector<8xf32>
    %1 = vector.multi_reduction <add>, %0, %cst [1] : vector<8x256xf32> to vector<8xf32>
    %2 = vector.shape_cast %1 : vector<8xf32> to vector<8x1xf32>
    %cst_1 = arith.constant 3.906250e-03 : f32
    %3 = vector.broadcast %cst_1 : f32 to vector<8x1xf32>
    %4 = arith.mulf %2, %3 : vector<8x1xf32>
    %5 = vector.broadcast %4 : vector<8x1xf32> to vector<8x256xf32>
    %6 = arith.subf %0, %5 : vector<8x256xf32>
    %7 = math.absf %6 : vector<8x256xf32>
    %8 = math.exp %7 : vector<8x256xf32>
    %9 = arith.mulf %6, %8 : vector<8x256xf32>
    %10 = arith.addf %0, %9 : vector<8x256xf32>
    %cst_2 = arith.constant 0.000000e+00 : f32
    %cst_3 = arith.constant 1.000000e+00 : f32
    %11 = vector.broadcast %cst_2 : f32 to vector<8x256xf32>
    %12 = arith.maximumf %11, %10 : vector<8x256xf32>
    %13 = vector.broadcast %cst_3 : f32 to vector<8x256xf32>
    %14 = arith.minimumf %13, %12 : vector<8x256xf32>
    %c0_4 = arith.constant 0 : index
    %c0_5 = arith.constant 0 : index
    %15 = vector.load %arg2[%c0_4, %c0_5] : memref<8x256xf32, #tpu.memory_space<vmem>>, vector<8x256xf32>
    tpu.vector_store %arg2[%c0_4, %c0_5], %14 {strides = array<i32>} : memref<8x256xf32, #tpu.memory_space<vmem>>, vector<8x256xf32>,
    return
  }
  func.func @transform_0(%arg0: i32) -> (i32, i32) {
    %c0_i32 = arith.constant 0 : i32
    %c0_i32_0 = arith.constant 0 : i32
    return %arg0, %c0_i32 : i32, i32
  }
  func.func @transform_1(%arg0: i32) -> (i32, i32) {
    %c0_i32 = arith.constant 0 : i32
    %c0_i32_0 = arith.constant 0 : i32
    return %arg0, %c0_i32 : i32, i32
  }
}

</mosaic_0001>

<llo_original>
// kernel: background_suppression.1
$region0: #{background_suppression.1}
  #allocation0 [shape = 'u32[]', space=smem, size = 0x4, offset = 0x4, fixed_abs, tag = 'smem constant byte address 0x4 - core index']
  #allocation1 [shape = 'u32[144,128]{1,0:T(1,128)}', space=vmem, size = 0x12000, scoped, tag = 'internal scratch']
  %s0 = inlined_call_operand.vmem [shape: f32[8,256], index: 0, kind: input, shape index: {}]
  %s1 = inlined_call_operand.vmem [shape: f32[8,256], index: 1, kind: output, shape index: {}]
  %s2 = sld [smem:[#allocation0]]
  $region14: #{background_suppression.1} parent=0
    _
  %s4 = ssub.s32 1, %s2
  %s5 = scalar_select 0, %s4, %s2
  // Predicated region
  $region2: #{background_suppression.1} parent=0 // pred_check
    _
  $region3: #{background_suppression.1} parent=0 // pred_check_branch
    %7 = sbr.rel (0) target = $region5
  $region4: #{background_suppression.1} parent=0 // pred_region
    _
  $region5: #{background_suppression.1} parent=0 // pred_fallthru
    _
  %v8 = vld [vmem:[%s0] sm:$0xff]
  %v9 = vld [vmem:[%s0 + $0x8] sm:$0xff]
  %v10 = vadd.f32 %v8, %v9
  %11 = vadd.xlane.f32.xlu0 %v10
  %v12 = vpop.xlane.xlu0 %11
  %v13 = vmul.f32 %v12, 0.00390625
  %v14 = vsub.f32 %v8, %v13
  %v15 = vsub.f32 %v9, %v13
  %v16 = vand.u32 2147483647, %v14
  %v17 = vand.u32 2147483647, %v15
  %v18 = vmul.f32 %v16, 1.442695
  %v19 = vpow.pop %v18
  %v20 = vmul.f32 %v17, 1.442695
  %v21 = vpow.pop %v20
  %v22 = vmul.f32 %v14, %v19
  %v23 = vmul.f32 %v15, %v21
  %v24 = vadd.f32 %v8, %v22
  %v25 = vadd.f32 %v9, %v23
  %v26 = vmax.f32 %v24, 0.0
  %v27 = vmax.f32 %v25, 0.0
  %v28 = vmin.f32 %v26, 1.0
  %v29 = vmin.f32 %v27, 1.0
  %30 = vst [vmem:[%s1] sm:$0xff] %v28
  %31 = vst [vmem:[%s1 + $0x8] sm:$0xff] %v29
  // Predicated region
  $region6: #{background_suppression.1} parent=0 // pred_check
    _
  $region7: #{background_suppression.1} parent=0 // pred_check_branch
    %33 = sbr.rel (0) target = $region9
  $region8: #{background_suppression.1} parent=0 // pred_region
    _
  $region9: #{background_suppression.1} parent=0 // pred_fallthru
    _
  // Predicated region
  $region10: #{background_suppression.1} parent=0 // pred_check
    _
  $region11: #{background_suppression.1} parent=0 // pred_check_branch
    %35 = sbr.rel (0) target = $region13
  $region12: #{background_suppression.1} parent=0 // pred_region
    _
  $region13: #{background_suppression.1} parent=0 // pred_fallthru
    _

</llo_original>
